<compile_context>
chip_gen: v7x
topology: tpu7x:2x2x1
jax: 0.10.0
libtpu: 0.0.40
codegen_flags: <defaults>
</compile_context>

<pallas_src>
import functools

import jax
import jax.numpy as jnp
from jax.experimental import pallas as pl
from jax.experimental.pallas import tpu as pltpu


# ---------------------------------------------------------------------------
# Per-generation VMEM sizing (review: derive tiles from a per-gen budget).
# ---------------------------------------------------------------------------
def _vmem_capacity_bytes():
    """Physical VMEM per TensorCore (128 MiB v5e/v6e, 64 MiB v7x)."""
    try:
        cap = getattr(pltpu.get_tpu_info(), "vmem_capacity_bytes", None)
        if cap:
            return int(cap)
    except Exception:
        pass
    return 64 * 1024 * 1024  # conservative fallback (v7x per-TC size)


def _vmem_limit_bytes():
    # 3/4 of physical: ~96 MiB on v5e/v6e, ~48 MiB on v7x.
    return (_vmem_capacity_bytes() * 3) // 4


def _block_budget_bytes(vmem_limit):
    # The dominant streaming block is double-buffered; leave headroom for the
    # small side blocks + compiler scratch.  -> ~16 MiB (v5e/v6e), ~8 MiB (v7x).
    return vmem_limit // 6


def _choose_c_tile(c):
    """Full channel dim if small (always a legal block), else 512."""
    return c if c <= 512 else 512


def _choose_hw_tile(hw, row_bytes, block_budget):
    """Full HW if one buffer fits the per-gen budget, else the largest
    multiple of 128 lanes that does (lane-dense, unmasked wide stores)."""
    if hw * row_bytes <= block_budget:
        return hw
    return max(128, (block_budget // row_bytes) // 128 * 128)


# ---------------------------------------------------------------------------
# Kernel 1: global average pool over HW  (N, C, HW) -> (N, C, 1)  [fp32]
# ---------------------------------------------------------------------------
def _global_avg_pool_kernel(x_ref, o_ref, *, hw_total, tile_hw, need_mask):
    t = pl.program_id(2)

    @pl.when(t == 0)
    def _():
        o_ref[...] = jnp.zeros_like(o_ref)

    x = x_ref[...].astype(jnp.float32)                 # (1, tile_c, tile_hw)
    if need_mask:                                      # ragged HW tail only
        lane = jax.lax.broadcasted_iota(jnp.int32, x.shape, 2)
        x = jnp.where(t * tile_hw + lane < hw_total, x, 0.0)

    # The cross-lane reduce hides under the input DMA (kernel is HBM-bound).
    o_ref[...] += jnp.sum(x, axis=2, keepdims=True)    # (1, tile_c, 1)

    @pl.when(t == pl.num_programs(2) - 1)
    def _():
        o_ref[...] *= jnp.float32(1.0 / hw_total)


def global_avg_pool(x_nc_hw):
    """x: (N, C, HW) -> pooled column (N, C, 1) in fp32."""
    N, C, HW = x_nc_hw.shape
    vmem_limit = _vmem_limit_bytes()
    budget = _block_budget_bytes(vmem_limit)

    tile_c = _choose_c_tile(C)
    # v7x megacore: keep >=2 parallel programs when N==1 and C fits one tile
    # (halving keeps tile_c a multiple of 8, so the block stays legal).
    while N * pl.cdiv(C, tile_c) < 2 and tile_c % 16 == 0 and tile_c >= 16:
        tile_c //= 2
    tile_hw = _choose_hw_tile(HW, tile_c * x_nc_hw.dtype.itemsize, budget)

    grid = (N, pl.cdiv(C, tile_c), pl.cdiv(HW, tile_hw))
    kernel = functools.partial(
        _global_avg_pool_kernel, hw_total=HW, tile_hw=tile_hw,
        need_mask=(HW % tile_hw) != 0)

    # NOTE: for a ragged C tail the padded input rows only sum garbage into
    # output rows that are out of bounds and therefore discarded by Pallas.
    # Do not reroute these partials through a shared scratch without masking C.
    return pl.pallas_call(
        kernel,
        out_shape=jax.ShapeDtypeStruct((N, C, 1), jnp.float32),
        grid_spec=pltpu.PrefetchScalarGridSpec(
            num_scalar_prefetch=0,
            grid=grid,
            in_specs=[pl.BlockSpec((1, tile_c, tile_hw),
                                   lambda n, c, t: (n, c, t))],
            out_specs=pl.BlockSpec((1, tile_c, 1), lambda n, c, t: (n, c, 0)),
        ),
        compiler_params=pltpu.CompilerParams(
            dimension_semantics=("parallel", "parallel", "arbitrary"),
            vmem_limit_bytes=vmem_limit),
    )(x_nc_hw)


# ---------------------------------------------------------------------------
# Kernel 2: broadcast-upsample  (N, C_out, 1) -> (N, C_out, HW)  [pure store]
# F.interpolate from a 1x1 source is an exact constant broadcast for any
# mode / align_corners, so this is a lane-dense broadcast store.
# ---------------------------------------------------------------------------
def _broadcast_upsample_kernel(y_ref, o_ref):
    o_ref[...] = jnp.broadcast_to(y_ref[...], o_ref.shape)


def broadcast_upsample(y_col, hw):
    """y_col: (N, C_out, 1) already in the output dtype -> (N, C_out, HW)."""
    N, C_out, _ = y_col.shape
    out_dtype = y_col.dtype
    vmem_limit = _vmem_limit_bytes()
    budget = _block_budget_bytes(vmem_limit)

    tile_co = _choose_c_tile(C_out)
    tile_hw = _choose_hw_tile(hw, tile_co * jnp.dtype(out_dtype).itemsize,
                              budget)
    # v7x megacore: if N x C_out-tiles alone cannot feed two TensorCores,
    # split the (fully parallel) HW axis instead.
    if N * pl.cdiv(C_out, tile_co) < 2 and tile_hw == hw and hw >= 256:
        tile_hw = max(128, (hw // 2) // 128 * 128)

    grid = (N, pl.cdiv(C_out, tile_co), pl.cdiv(hw, tile_hw))
    return pl.pallas_call(
        _broadcast_upsample_kernel,
        out_shape=jax.ShapeDtypeStruct((N, C_out, hw), out_dtype),
        grid_spec=pltpu.PrefetchScalarGridSpec(
            num_scalar_prefetch=0,
            grid=grid,
            in_specs=[pl.BlockSpec((1, tile_co, 1), lambda n, c, t: (n, c, 0))],
            out_specs=pl.BlockSpec((1, tile_co, tile_hw),
                                   lambda n, c, t: (n, c, t)),
        ),
        compiler_params=pltpu.CompilerParams(
            dimension_semantics=("parallel", "parallel", "parallel"),
            vmem_limit_bytes=vmem_limit),
    )(y_col)


# ---------------------------------------------------------------------------
# ASPPPooling forward (NCHW in, NCHW out — matches the PyTorch module).
# ---------------------------------------------------------------------------
def aspp_pooling_forward(x_nchw, params, eps=1e-5, out_dtype=None):
    N, C_in, H, W = x_nchw.shape
    HW = H * W
    # If the downstream ASPP concat accepts bf16, pass out_dtype=jnp.bfloat16
    # to halve the dominant HBM write stream (largest available win).
    out_dtype = x_nchw.dtype if out_dtype is None else out_dtype

    # Kernel 1: AdaptiveAvgPool2d(1).
    pooled = global_avg_pool(x_nchw.reshape(N, C_in, HW))[:, :, 0]   # (N, C_in) f32

    # Hoisted 1x1 conv + folded inference-BN + ReLU.  The matmul is only
    # N*C_out*C_in MAC (trivial), so it runs as a plain f32 XLA dot between
    # the two pallas_calls; BN scale is folded into the weight rows and only
    # the shift remains as a bias.
    inv_std = 1.0 / jnp.sqrt(params["var"] + eps)
    scale = params["gamma"] * inv_std                                # (C_out,)
    shift = params["beta"] - params["mean"] * scale                  # (C_out,)
    w_scaled = params["weight"] * scale[:, None]                     # (C_out, C_in)
    y = jnp.matmul(pooled, w_scaled.T,
                   precision=jax.lax.Precision.HIGHEST) + shift      # (N, C_out)
    y = jnp.maximum(y, 0.0)
    y_col = y.astype(out_dtype)[:, :, None]                          # (N, C_out, 1)

    # Kernel 2: F.interpolate to (H, W) from a 1x1 map == broadcast.
    out = broadcast_upsample(y_col, HW)                              # (N, C_out, HW)
    return out.reshape(N, -1, H, W)


# ---------------------------------------------------------------------------
# Deterministic parameter init (Conv2d bias=False + BatchNorm running stats).
# ---------------------------------------------------------------------------
def init_params(key, in_channels, out_channels):
    k1, k2, k3, k4, k5 = jax.random.split(key, 5)
    return dict(
        weight=0.05 * jax.random.normal(k1, (out_channels, in_channels),
                                        jnp.float32),
        gamma=1.0 + 0.1 * jax.random.normal(k2, (out_channels,), jnp.float32),
        beta=0.1 * jax.random.normal(k3, (out_channels,), jnp.float32),
        mean=0.1 * jax.random.normal(k4, (out_channels,), jnp.float32),
        var=1.0 + 0.5 * jax.random.uniform(k5, (out_channels,), jnp.float32),
    )


if __name__ == "__main__":
    key = jax.random.PRNGKey(0)
    kx, kp = jax.random.split(key)

    N, C_in, C_out, H, W = 2, 64, 32, 16, 16
    x = jax.random.normal(kx, (N, C_in, H, W), jnp.float32)
    params = init_params(kp, C_in, C_out)

    fwd = jax.jit(aspp_pooling_forward)
    out = fwd(x, params)
    jax.block_until_ready(out)

    # Pure-JAX fp32 reference (PyTorch semantics: pool -> 1x1 conv -> BN ->
    # ReLU -> interpolate from 1x1 == broadcast).
    pooled_ref = jnp.mean(x, axis=(2, 3))                            # (N, C_in)
    scale_ref = params["gamma"] / jnp.sqrt(params["var"] + 1e-5)
    shift_ref = params["beta"] - params["mean"] * scale_ref
    y_ref = jnp.maximum(
        jnp.matmul(pooled_ref, params["weight"].T,
                   precision=jax.lax.Precision.HIGHEST) * scale_ref + shift_ref,
        0.0)                                                         # (N, C_out)
    ref = jnp.broadcast_to(y_ref[:, :, None, None], (N, C_out, H, W))

    assert out.shape == (N, C_out, H, W), out.shape
    assert bool(jnp.all(jnp.isfinite(out)))
    max_err = float(jnp.max(jnp.abs(out - ref)))
    # Projection is now fully f32 (no bf16 matvec) -> tight tolerance.
    assert max_err < 1e-4, f"max abs error {max_err}"
    print("KERNEL_OK")
</pallas_src>

<mosaic_0001>
module attributes {stable_mosaic.version = 11 : i64} {
  func.func @_global_avg_pool_kernel(%arg0: i32, %arg1: i32, %arg2: i32, %arg3: memref<1x64x256xf32, #tpu.memory_space<vmem>>, %arg4: memref<1x64x1xf32, #tpu.memory_space<vmem>>) attributes {dimension_semantics = [#tpu.dimension_semantics<parallel>, #tpu.dimension_semantics<parallel>, #tpu.dimension_semantics<arbitrary>], iteration_bounds = array<i64: 2, 1, 1>, scalar_prefetch = 0 : i64, scratch_operands = 0 : i64, tpu.core_type = #tpu.core_type<tc>, window_params = [{transform_indices = @transform_0, window_bounds = array<i64: 1, 64, 256>}, {transform_indices = @transform_1, window_bounds = array<i64: 1, 64, 1>}]} {
    %c0_i32 = arith.constant 0 : i32
    %0 = arith.cmpi eq, %arg2, %c0_i32 : i32
    %1 = arith.extui %0 : i1 to i32
    %c0_i32_0 = arith.constant 0 : i32
    %2 = arith.cmpi ne, %1, %c0_i32_0 : i32
    scf.if %2 {
      %cst_11 = arith.constant 0.000000e+00 : f32
      %12 = vector.broadcast %cst_11 : f32 to vector<1x64x1xf32>
      %c0_12 = arith.constant 0 : index
      %c0_13 = arith.constant 0 : index
      %c0_14 = arith.constant 0 : index
      %13 = vector.load %arg4[%c0_12, %c0_13, %c0_14] : memref<1x64x1xf32, #tpu.memory_space<vmem>>, vector<1x64x1xf32>
      tpu.vector_store %arg4[%c0_12, %c0_13, %c0_14], %12 {strides = array<i32>} : memref<1x64x1xf32, #tpu.memory_space<vmem>>, vector<1x64x1xf32>,
    } else {
    }
    %c0 = arith.constant 0 : index
    %c0_1 = arith.constant 0 : index
    %c0_2 = arith.constant 0 : index
    %3 = vector.load %arg3[%c0, %c0_1, %c0_2] : memref<1x64x256xf32, #tpu.memory_space<vmem>>, vector<1x64x256xf32>
    %c0_3 = arith.constant 0 : index
    %c0_4 = arith.constant 0 : index
    %c0_5 = arith.constant 0 : index
    %4 = vector.load %arg4[%c0_3, %c0_4, %c0_5] : memref<1x64x1xf32, #tpu.memory_space<vmem>>, vector<1x64x1xf32>
    %cst = arith.constant dense<0.000000e+00> : vector<1x64xf32>
    %5 = vector.multi_reduction <add>, %3, %cst [2] : vector<1x64x256xf32> to vector<1x64xf32>
    %6 = vector.shape_cast %5 : vector<1x64xf32> to vector<1x64x1xf32>
    %7 = arith.addf %4, %6 : vector<1x64x1xf32>
    %c0_6 = arith.constant 0 : index
    %c0_7 = arith.constant 0 : index
    %c0_8 = arith.constant 0 : index
    %8 = vector.load %arg4[%c0_6, %c0_7, %c0_8] : memref<1x64x1xf32, #tpu.memory_space<vmem>>, vector<1x64x1xf32>
    tpu.vector_store %arg4[%c0_6, %c0_7, %c0_8], %7 {strides = array<i32>} : memref<1x64x1xf32, #tpu.memory_space<vmem>>, vector<1x64x1xf32>,
    %c0_i32_9 = arith.constant 0 : i32
    %9 = arith.cmpi eq, %arg2, %c0_i32_9 : i32
    %10 = arith.extui %9 : i1 to i32
    %c0_i32_10 = arith.constant 0 : i32
    %11 = arith.cmpi ne, %10, %c0_i32_10 : i32
    scf.if %11 {
      %c0_11 = arith.constant 0 : index
      %c0_12 = arith.constant 0 : index
      %c0_13 = arith.constant 0 : index
      %12 = vector.load %arg4[%c0_11, %c0_12, %c0_13] : memref<1x64x1xf32, #tpu.memory_space<vmem>>, vector<1x64x1xf32>
      %cst_14 = arith.constant 3.906250e-03 : f32
      %13 = vector.broadcast %cst_14 : f32 to vector<1x64x1xf32>
      %14 = arith.mulf %12, %13 : vector<1x64x1xf32>
      %c0_15 = arith.constant 0 : index
      %c0_16 = arith.constant 0 : index
      %c0_17 = arith.constant 0 : index
      %15 = vector.load %arg4[%c0_15, %c0_16, %c0_17] : memref<1x64x1xf32, #tpu.memory_space<vmem>>, vector<1x64x1xf32>
      tpu.vector_store %arg4[%c0_15, %c0_16, %c0_17], %14 {strides = array<i32>} : memref<1x64x1xf32, #tpu.memory_space<vmem>>, vector<1x64x1xf32>,
    } else {
    }
    return
  }
  func.func @transform_0(%arg0: i32, %arg1: i32, %arg2: i32) -> (i32, i32, i32) {
    %c0_i32 = arith.constant 0 : i32
    return %arg0, %arg1, %arg2 : i32, i32, i32
  }
  func.func @transform_1(%arg0: i32, %arg1: i32, %arg2: i32) -> (i32, i32, i32) {
    %c0_i32 = arith.constant 0 : i32
    %c0_i32_0 = arith.constant 0 : i32
    return %arg0, %arg1, %c0_i32 : i32, i32, i32
  }
}

module attributes {stable_mosaic.version = 11 : i64} {
  func.func @_broadcast_upsample_kernel(%arg0: i32, %arg1: i32, %arg2: i32, %arg3: memref<1x32x1xf32, #tpu.memory_space<vmem>>, %arg4: memref<1x32x256xf32, #tpu.memory_space<vmem>>) attributes {dimension_semantics = [#tpu.dimension_semantics<parallel>, #tpu.dimension_semantics<parallel>, #tpu.dimension_semantics<parallel>], iteration_bounds = array<i64: 2, 1, 1>, scalar_prefetch = 0 : i64, scratch_operands = 0 : i64, tpu.core_type = #tpu.core_type<tc>, window_params = [{transform_indices = @transform_0, window_bounds = array<i64: 1, 32, 1>}, {transform_indices = @transform_1, window_bounds = array<i64: 1, 32, 256>}]} {
    %c0 = arith.constant 0 : index
    %c0_0 = arith.constant 0 : index
    %c0_1 = arith.constant 0 : index
    %0 = vector.load %arg3[%c0, %c0_0, %c0_1] : memref<1x32x1xf32, #tpu.memory_space<vmem>>, vector<1x32x1xf32>
    %1 = vector.shape_cast %0 : vector<1x32x1xf32> to vector<1x32x1xf32>
    %2 = vector.broadcast %1 : vector<1x32x1xf32> to vector<1x32x256xf32>
    %c0_2 = arith.constant 0 : index
    %c0_3 = arith.constant 0 : index
    %c0_4 = arith.constant 0 : index
    %3 = vector.load %arg4[%c0_2, %c0_3, %c0_4] : memref<1x32x256xf32, #tpu.memory_space<vmem>>, vector<1x32x256xf32>
    tpu.vector_store %arg4[%c0_2, %c0_3, %c0_4], %2 {strides = array<i32>} : memref<1x32x256xf32, #tpu.memory_space<vmem>>, vector<1x32x256xf32>,
    return
  }
  func.func @transform_0(%arg0: i32, %arg1: i32, %arg2: i32) -> (i32, i32, i32) {
    %c0_i32 = arith.constant 0 : i32
    %c0_i32_0 = arith.constant 0 : i32
    return %arg0, %arg1, %c0_i32 : i32, i32, i32
  }
  func.func @transform_1(%arg0: i32, %arg1: i32, %arg2: i32) -> (i32, i32, i32) {
    %c0_i32 = arith.constant 0 : i32
    return %arg0, %arg1, %arg2 : i32, i32, i32
  }
}

</mosaic_0001>

<llo_original>
// kernel: aspp_pooling_forward.2
$region0: #{aspp_pooling_forward.2}
  #allocation0 [shape = 'u32[]', space=smem, size = 0x4, offset = 0x4, fixed_abs, tag = 'smem constant byte address 0x4 - core index']
  #allocation1 [shape = 'u32[144,128]{1,0:T(1,128)}', space=vmem, size = 0x12000, scoped, tag = 'internal scratch']
  %s0 = inlined_call_operand.vmem [shape: f32[2,64,256], index: 0, kind: input, shape index: {}]
  %s1 = inlined_call_operand.vmem [shape: f32[2,64,1], index: 1, kind: output, shape index: {}]
  %s2 = sld [smem:[#allocation0]]
  $region45: #{aspp_pooling_forward.2} parent=0
    _
  %s4 = ssub.s32 1, %s2
  %s5 = scalar_select 0, %s4, %s2
  loop: start=0, step=1, limit=4
  $region2: #{aspp_pooling_forward.2} parent=0 // loop_pre_header
    _
  $region3: #{aspp_pooling_forward.2} parent=0 // loop_header
    %s7 = sphi 0, %s11
    %p8 = scmp.ge.s32.totalorder %s7, 4
    %s14 = sphi 0, %s33
    %s15 = sphi 0, %s29
    %s16 = sphi 0, %s25
    %s17 = sphi 0, %s14
    %s18 = sphi 0, %s15
    %s19 = sphi 0, %s16
    %s20 = sphi 0, %s17
    %s21 = sphi 0, %s18
    %s22 = sphi 0, %s19
    %s40 = sphi 0, %s42
    %s43 = sphi 0, %s40
    %s44 = sphi 0, %s43
    %s60 = sphi 0, %s44
    %s68 = sphi 0, %s70
    %s71 = sphi 0, %s68
    %s72 = sphi 0, %s71
    %s88 = sphi 0, %s72
  $region4: #{aspp_pooling_forward.2} parent=0 // loop_header_branch
    %10 = sbr.rel (%p8) target = $region8
  $region5: #{aspp_pooling_forward.2} parent=0 // loop_body
    %s12 = ssub.s32 %s7, 1
    %s13 = ssub.s32 %s7, 2
    %s23 = sadd.s32 1, %s16
    %p24 = scmp.ge.s32.totalorder %s23, 1
    %s25 = scalar_select %p24, 0, %s23
    %s26 = sadd.s32 1, %s15
    %s27 = scalar_select %p24, %s26, %s15
    %p28 = scmp.ge.s32.totalorder %s27, 1
    %s29 = scalar_select %p28, 0, %s27
    %s30 = sadd.s32 1, %s14
    %s31 = scalar_select %p28, %s30, %s14
    %p32 = scmp.ge.s32.totalorder %s31, 2
    %s33 = scalar_select %p32, 0, %s31
    %s34 = ssub.s32 %s14, %s33
    %s35 = ssub.s32 %s15, %s29
    %s36 = sor.u32 %s34, %s35
    %s37 = ssub.s32 %s16, %s25
    %s38 = sor.u32 %s36, %s37
    %p39 = scmp.eq.s32.totalorder %s38, 0
    %s41 = sadd.s32 %s40, 1
    %s42 = scalar_select %p39, %s40, %s41
    %p45 = pneg %p39
    %p46 = scmp.eq.s32.totalorder %s7, 1
    %p47 = por %p45, %p46
    %p48 = scmp.ne.s32.totalorder %s40, %s43
    %p49 = scmp.eq.s32.totalorder %s7, 0
    %p50 = por %p48, %p49
    %p51 = scmp.ne.s32.totalorder %s40, %s43
    %p52 = scmp.eq.s32.totalorder %s12, 1
    %p53 = por %p51, %p52
    %p54 = scmp.ne.s32.totalorder %s43, %s44
    %p55 = scmp.eq.s32.totalorder %s12, 0
    %p56 = por %p54, %p55
    %p57 = scmp.ne.s32.totalorder %s43, %s44
    %p58 = scmp.eq.s32.totalorder %s13, 1
    %p59 = por %p57, %p58
    %p61 = scmp.ne.s32.totalorder %s44, %s60
    %p62 = scmp.eq.s32.totalorder %s13, 0
    %p63 = por %p61, %p62
    %s64 = ssub.s32 %s14, %s33
    %s65 = ssub.s32 %s15, %s29
    %s66 = sor.u32 %s64, %s65
    %p67 = scmp.eq.s32.totalorder %s66, 0
    %s69 = sadd.s32 %s68, 1
    %s70 = scalar_select %p67, %s68, %s69
    %p73 = pneg %p67
    %p74 = scmp.eq.s32.totalorder %s7, 1
    %p75 = por %p73, %p74
    %p76 = scmp.ne.s32.totalorder %s68, %s71
    %p77 = scmp.eq.s32.totalorder %s7, 0
    %p78 = por %p76, %p77
    %p79 = scmp.ne.s32.totalorder %s68, %s71
    %p80 = scmp.eq.s32.totalorder %s12, 1
    %p81 = por %p79, %p80
    %p82 = scmp.ne.s32.totalorder %s71, %s72
    %p83 = scmp.eq.s32.totalorder %s12, 0
    %p84 = por %p82, %p83
    %p85 = scmp.ne.s32.totalorder %s71, %s72
    %p86 = scmp.eq.s32.totalorder %s13, 1
    %p87 = por %p85, %p86
    %p89 = scmp.ne.s32.totalorder %s72, %s88
    %p90 = scmp.eq.s32.totalorder %s13, 0
    %p91 = por %p89, %p90
    %p92 = scmp.le.s32.totalorder 1, %s7
    %p93 = scmp.lt.s32.totalorder %s7, 3
    %p94 = pnand %p92, %p93
    %p95 = pneg %p94
    // Predicated region
    $region9: #{aspp_pooling_forward.2} parent=5 // pred_check
      _
    $region10: #{aspp_pooling_forward.2} parent=5 // pred_check_branch
      %97 = sbr.rel (%p94) target = $region12
    $region11: #{aspp_pooling_forward.2} parent=5 // pred_region
      %s98 = ssub.s32 %s7, 1
    $region12: #{aspp_pooling_forward.2} parent=5 // pred_fallthru
      _
    %p99 = scmp.lt.s32.totalorder %s7, 2
    // Predicated region
    $region13: #{aspp_pooling_forward.2} parent=5 // pred_check
      %p100 = pneg %p99
    $region14: #{aspp_pooling_forward.2} parent=5 // pred_check_branch
      %102 = sbr.rel (%p100) target = $region16
    $region15: #{aspp_pooling_forward.2} parent=5 // pred_region
      // Predicated region
      $region17: #{aspp_pooling_forward.2} parent=15 // pred_check
        %p103 = pneg %p50
      $region18: #{aspp_pooling_forward.2} parent=15 // pred_check_branch
        %105 = sbr.rel (%p103) target = $region20
      $region19: #{aspp_pooling_forward.2} parent=15 // pred_region
        %s106 = smul.u32 8, %s15
        %s107 = smul.u32 2, %s16
        %p108 = scmp.lt.s32.totalorder %s14, 1
        %s109 = scalar_select %p108, %s14, 1
        %p110 = scmp.lt.s32.totalorder %s106, 7
        %s111 = scalar_select %p110, %s106, 7
        %p112 = scmp.lt.s32.totalorder %s107, 1
        %s113 = scalar_select %p112, %s107, 1
        %s114 = smul.addr %s111, 2
        %s115 = sadd.s32 %s113, %s114
        %s116 = smul.addr %s109, 16
        %s117 = sadd.s32 %s115, %s116
        %s118 = smul.addr %s117, 8
        %s119 = scalar_lea.vmem %s0, %s118
        %s120 = smul.u32 8, %s15
        %s121 = smul.u32 2, %s16
      $region20: #{aspp_pooling_forward.2} parent=15 // pred_fallthru
        _
    $region16: #{aspp_pooling_forward.2} parent=5 // pred_fallthru
      _
    %p122 = scmp.le.s32.totalorder 1, %s7
    %p123 = scmp.lt.s32.totalorder %s7, 3
    %p124 = pnand %p122, %p123
    %p125 = pneg %p124
    // Predicated region
    $region21: #{aspp_pooling_forward.2} parent=5 // pred_check
      _
    $region22: #{aspp_pooling_forward.2} parent=5 // pred_check_branch
      %127 = sbr.rel (%p124) target = $region24
    $region23: #{aspp_pooling_forward.2} parent=5 // pred_region
      %s128 = ssub.s32 %s7, 1
      %s129 = smul.u32 8, %s18
      %s130 = smul.u32 2, %s19
      %p131 = scmp.lt.s32.totalorder %s17, 1
      %s132 = scalar_select %p131, %s17, 1
      %p133 = scmp.lt.s32.totalorder %s129, 7
      %s134 = scalar_select %p133, %s129, 7
      %p135 = scmp.lt.s32.totalorder %s130, 1
      %s136 = scalar_select %p135, %s130, 1
      %s137 = smul.addr %s134, 2
      %s138 = sadd.s32 %s136, %s137
      %s139 = smul.addr %s132, 16
      %s140 = sadd.s32 %s138, %s139
      %s141 = smul.addr %s140, 8
      %s142 = scalar_lea.vmem %s0, %s141
      %p143 = pneg %p56
      %p144 = pneg %p53
      %p145 = pneg %p84
      %p146 = pneg %p81
      %s147 = smul.u32 8, %s18
      %p148 = scmp.lt.s32.totalorder %s17, 1
      %s149 = scalar_select %p148, %s17, 1
      %p150 = scmp.lt.s32.totalorder %s147, 7
      %s151 = scalar_select %p150, %s147, 7
      %s152 = smul.addr %s149, 8
      %s153 = sadd.s32 %s151, %s152
      %s154 = smul.addr %s153, 8
      %s155 = scalar_lea.vmem %s1, %s154
      %s156 = smul.u32 8, %s18
      %s157 = smul.u32 2, %s19
      %p158 = scmp.lt.s32.totalorder %s17, 1
      %s159 = scalar_select %p158, %s17, 1
      %p160 = scmp.lt.s32.totalorder %s156, 7
      %s161 = scalar_select %p160, %s156, 7
      %p162 = scmp.lt.s32.totalorder %s157, 1
      %s163 = scalar_select %p162, %s157, 1
      %s164 = smul.addr %s161, 2
      %s165 = sadd.s32 %s163, %s164
      %s166 = smul.addr %s159, 16
      %s167 = sadd.s32 %s165, %s166
      %s168 = smul.addr %s167, 8
      %s169 = scalar_lea.vmem %s0, %s168
      %s170 = smul.u32 8, %s18
      %s171 = smul.u32 2, %s19
      %s172 = smul.u32 8, %s18
      %p173 = scmp.lt.s32.totalorder %s17, 1
      %s174 = scalar_select %p173, %s17, 1
      %p175 = scmp.lt.s32.totalorder %s172, 7
      %s176 = scalar_select %p175, %s172, 7
      %s177 = smul.addr %s174, 8
      %s178 = sadd.s32 %s176, %s177
      %s179 = smul.addr %s178, 8
      %s180 = scalar_lea.vmem %s1, %s179
      %s181 = smul.u32 8, %s18
      %p182 = scmp.eq.s32.totalorder %s19, 0
      // Predicated region
      $region25: #{aspp_pooling_forward.2} parent=23 // pred_check
        %p183 = pneg %p182
      $region26: #{aspp_pooling_forward.2} parent=23 // pred_check_branch
        %185 = sbr.rel (%p183) target = $region28
      $region27: #{aspp_pooling_forward.2} parent=23 // pred_region
        %vm186 = vcmask 7168
        %187 = vst.msk [vmem:[%s180] sm:$0xff] %vm186, 0.0
        %188 = vst.msk [vmem:[%s180 + $0x8] sm:$0xff] %vm186, 0.0
        %189 = vst.msk [vmem:[%s180 + $0x10] sm:$0xff] %vm186, 0.0
        %190 = vst.msk [vmem:[%s180 + $0x18] sm:$0xff] %vm186, 0.0
        %191 = vst.msk [vmem:[%s180 + $0x20] sm:$0xff] %vm186, 0.0
        %192 = vst.msk [vmem:[%s180 + $0x28] sm:$0xff] %vm186, 0.0
        %193 = vst.msk [vmem:[%s180 + $0x30] sm:$0xff] %vm186, 0.0
        %194 = vst.msk [vmem:[%s180 + $0x38] sm:$0xff] %vm186, 0.0
      $region28: #{aspp_pooling_forward.2} parent=23 // pred_fallthru
        _
      %v195 = vld [vmem:[%s169] sm:$0xff]
      %v196 = vld [vmem:[%s169 + $0x8] sm:$0xff]
      %v197 = vld [vmem:[%s169 + $0x10] sm:$0xff]
      %v198 = vld [vmem:[%s169 + $0x18] sm:$0xff]
      %v199 = vld [vmem:[%s169 + $0x20] sm:$0xff]
      %v200 = vld [vmem:[%s169 + $0x28] sm:$0xff]
      %v201 = vld [vmem:[%s169 + $0x30] sm:$0xff]
      %v202 = vld [vmem:[%s169 + $0x38] sm:$0xff]
      %v203 = vld [vmem:[%s169 + $0x40] sm:$0xff]
      %v204 = vld [vmem:[%s169 + $0x48] sm:$0xff]
      %v205 = vld [vmem:[%s169 + $0x50] sm:$0xff]
      %v206 = vld [vmem:[%s169 + $0x58] sm:$0xff]
      %v207 = vld [vmem:[%s169 + $0x60] sm:$0xff]
      %v208 = vld [vmem:[%s169 + $0x68] sm:$0xff]
      %v209 = vld [vmem:[%s169 + $0x70] sm:$0xff]
      %v210 = vld [vmem:[%s169 + $0x78] sm:$0xff]
      %v211 = vld [vmem:[%s180] sm:$0xff]
      %v212 = vld [vmem:[%s180 + $0x8] sm:$0xff]
      %v213 = vld [vmem:[%s180 + $0x10] sm:$0xff]
      %v214 = vld [vmem:[%s180 + $0x18] sm:$0xff]
      %v215 = vld [vmem:[%s180 + $0x20] sm:$0xff]
      %v216 = vld [vmem:[%s180 + $0x28] sm:$0xff]
      %v217 = vld [vmem:[%s180 + $0x30] sm:$0xff]
      %v218 = vld [vmem:[%s180 + $0x38] sm:$0xff]
      %v219 = vadd.f32 %v195, %v196
      %220 = vadd.xlane.f32.xlu0 %v219
      %v221 = vpop.xlane.xlu0 %220
      %v222 = vadd.f32 %v197, %v198
      %223 = vadd.xlane.f32.xlu0 %v222
      %v224 = vpop.xlane.xlu0 %223
      %v225 = vadd.f32 %v199, %v200
      %226 = vadd.xlane.f32.xlu0 %v225
      %v227 = vpop.xlane.xlu0 %226
      %v228 = vadd.f32 %v201, %v202
      %229 = vadd.xlane.f32.xlu0 %v228
      %v230 = vpop.xlane.xlu0 %229
      %v231 = vadd.f32 %v203, %v204
      %232 = vadd.xlane.f32.xlu0 %v231
      %v233 = vpop.xlane.xlu0 %232
      %v234 = vadd.f32 %v205, %v206
      %235 = vadd.xlane.f32.xlu0 %v234
      %v236 = vpop.xlane.xlu0 %235
      %v237 = vadd.f32 %v207, %v208
      %238 = vadd.xlane.f32.xlu0 %v237
      %v239 = vpop.xlane.xlu0 %238
      %v240 = vadd.f32 %v209, %v210
      %241 = vadd.xlane.f32.xlu0 %v240
      %v242 = vpop.xlane.xlu0 %241
      %v243 = vadd.f32 %v211, %v221
      %v244 = vadd.f32 %v212, %v224
      %v245 = vadd.f32 %v213, %v227
      %v246 = vadd.f32 %v214, %v230
      %v247 = vadd.f32 %v215, %v233
      %v248 = vadd.f32 %v216, %v236
      %v249 = vadd.f32 %v217, %v239
      %v250 = vadd.f32 %v218, %v242
      %vm251 = vcmask 7168
      %252 = vst.msk [vmem:[%s180] sm:$0xff] %vm251, %v243
      %253 = vst.msk [vmem:[%s180 + $0x8] sm:$0xff] %vm251, %v244
      %254 = vst.msk [vmem:[%s180 + $0x10] sm:$0xff] %vm251, %v245
      %255 = vst.msk [vmem:[%s180 + $0x18] sm:$0xff] %vm251, %v246
      %256 = vst.msk [vmem:[%s180 + $0x20] sm:$0xff] %vm251, %v247
      %257 = vst.msk [vmem:[%s180 + $0x28] sm:$0xff] %vm251, %v248
      %258 = vst.msk [vmem:[%s180 + $0x30] sm:$0xff] %vm251, %v249
      %259 = vst.msk [vmem:[%s180 + $0x38] sm:$0xff] %vm251, %v250
      // Predicated region
      $region29: #{aspp_pooling_forward.2} parent=23 // pred_check
        %p260 = pneg %p182
      $region30: #{aspp_pooling_forward.2} parent=23 // pred_check_branch
        %262 = sbr.rel (%p260) target = $region32
      $region31: #{aspp_pooling_forward.2} parent=23 // pred_region
        %v263 = vld [vmem:[%s180] sm:$0xff]
        %v264 = vld [vmem:[%s180 + $0x8] sm:$0xff]
        %v265 = vld [vmem:[%s180 + $0x10] sm:$0xff]
        %v266 = vld [vmem:[%s180 + $0x18] sm:$0xff]
        %v267 = vld [vmem:[%s180 + $0x20] sm:$0xff]
        %v268 = vld [vmem:[%s180 + $0x28] sm:$0xff]
        %v269 = vld [vmem:[%s180 + $0x30] sm:$0xff]
        %v270 = vld [vmem:[%s180 + $0x38] sm:$0xff]
        %v271 = vmul.f32 %v263, 0.00390625
        %v272 = vmul.f32 %v264, 0.00390625
        %v273 = vmul.f32 %v265, 0.00390625
        %v274 = vmul.f32 %v266, 0.00390625
        %v275 = vmul.f32 %v267, 0.00390625
        %v276 = vmul.f32 %v268, 0.00390625
        %v277 = vmul.f32 %v269, 0.00390625
        %v278 = vmul.f32 %v270, 0.00390625
        %279 = vst.msk [vmem:[%s180] sm:$0xff] %vm251, %v271
        %280 = vst.msk [vmem:[%s180 + $0x8] sm:$0xff] %vm251, %v272
        %281 = vst.msk [vmem:[%s180 + $0x10] sm:$0xff] %vm251, %v273
        %282 = vst.msk [vmem:[%s180 + $0x18] sm:$0xff] %vm251, %v274
        %283 = vst.msk [vmem:[%s180 + $0x20] sm:$0xff] %vm251, %v275
        %284 = vst.msk [vmem:[%s180 + $0x28] sm:$0xff] %vm251, %v276
        %285 = vst.msk [vmem:[%s180 + $0x30] sm:$0xff] %vm251, %v277
        %286 = vst.msk [vmem:[%s180 + $0x38] sm:$0xff] %vm251, %v278
      $region32: #{aspp_pooling_forward.2} parent=23 // pred_fallthru
        _
      %s287 = smul.u32 8, %s18
      %p288 = scmp.lt.s32.totalorder %s17, 1
      %s289 = scalar_select %p288, %s17, 1
      %p290 = scmp.lt.s32.totalorder %s287, 7
      %s291 = scalar_select %p290, %s287, 7
      %s292 = smul.addr %s289, 8
      %s293 = sadd.s32 %s291, %s292
      %s294 = smul.addr %s293, 8
      %s295 = scalar_lea.vmem %s1, %s294
      // Predicated region
      $region33: #{aspp_pooling_forward.2} parent=23 // pred_check
        %p296 = pneg %p81
      $region34: #{aspp_pooling_forward.2} parent=23 // pred_check_branch
        %298 = sbr.rel (%p296) target = $region36
      $region35: #{aspp_pooling_forward.2} parent=23 // pred_region
        %s299 = smul.u32 8, %s18
      $region36: #{aspp_pooling_forward.2} parent=23 // pred_fallthru
        _
    $region24: #{aspp_pooling_forward.2} parent=5 // pred_fallthru
      _
    %p300 = scmp.le.s32.totalorder 2, %s7
    // Predicated region
    $region37: #{aspp_pooling_forward.2} parent=5 // pred_check
      %p301 = pneg %p300
    $region38: #{aspp_pooling_forward.2} parent=5 // pred_check_branch
      %303 = sbr.rel (%p301) target = $region40
    $region39: #{aspp_pooling_forward.2} parent=5 // pred_region
      %s304 = ssub.s32 %s7, 2
      // Predicated region
      $region41: #{aspp_pooling_forward.2} parent=39 // pred_check
        %p305 = pneg %p87
      $region42: #{aspp_pooling_forward.2} parent=39 // pred_check_branch
        %307 = sbr.rel (%p305) target = $region44
      $region43: #{aspp_pooling_forward.2} parent=39 // pred_region
        %s308 = smul.u32 8, %s21
        %p309 = scmp.lt.s32.totalorder %s20, 1
        %s310 = scalar_select %p309, %s20, 1
        %p311 = scmp.lt.s32.totalorder %s308, 7
        %s312 = scalar_select %p311, %s308, 7
        %s313 = smul.addr %s310, 8
        %s314 = sadd.s32 %s312, %s313
        %s315 = smul.addr %s314, 8
        %s316 = scalar_lea.vmem %s1, %s315
      $region44: #{aspp_pooling_forward.2} parent=39 // pred_fallthru
        _
    $region40: #{aspp_pooling_forward.2} parent=5 // pred_fallthru
      _
  $region6: #{aspp_pooling_forward.2} parent=0 // loop_footer
    %s11 = sadd.s32 1, %s7
  $region7: #{aspp_pooling_forward.2} parent=0 // loop_footer_branch
    %6 = sbr.rel target = $region3
  $region8: #{aspp_pooling_forward.2} parent=0 // loop_exit
    _

// kernel: aspp_pooling_forward.3
$region0: #{aspp_pooling_forward.3}
  #allocation0 [shape = 'u32[]', space=smem, size = 0x4, offset = 0x4, fixed_abs, tag = 'smem constant byte address 0x4 - core index']
  #allocation1 [shape = 'u32[144,128]{1,0:T(1,128)}', space=vmem, size = 0x12000, scoped, tag = 'internal scratch']
  %s0 = inlined_call_operand.vmem [shape: f32[2,32,1], index: 0, kind: input, shape index: {}]
  %s1 = inlined_call_operand.vmem [shape: f32[2,32,256], index: 1, kind: output, shape index: {}]
  %s2 = sld [smem:[#allocation0]]
  $region37: #{aspp_pooling_forward.3} parent=0
    _
  %s4 = ssub.s32 1, %s2
  %s5 = scalar_select 0, %s4, %s2
  loop: start=0, step=1, limit=4
  $region2: #{aspp_pooling_forward.3} parent=0 // loop_pre_header
    _
  $region3: #{aspp_pooling_forward.3} parent=0 // loop_header
    %s7 = sphi 0, %s11
    %p8 = scmp.ge.s32.totalorder %s7, 4
    %s14 = sphi 0, %s33
    %s15 = sphi 0, %s29
    %s16 = sphi 0, %s25
    %s17 = sphi 0, %s14
    %s18 = sphi 0, %s15
    %s19 = sphi 0, %s16
    %s20 = sphi 0, %s17
    %s21 = sphi 0, %s18
    %s22 = sphi 0, %s19
    %s38 = sphi 0, %s40
    %s41 = sphi 0, %s38
    %s42 = sphi 0, %s41
    %s58 = sphi 0, %s42
    %s68 = sphi 0, %s70
    %s71 = sphi 0, %s68
    %s72 = sphi 0, %s71
    %s88 = sphi 0, %s72
  $region4: #{aspp_pooling_forward.3} parent=0 // loop_header_branch
    %10 = sbr.rel (%p8) target = $region8
  $region5: #{aspp_pooling_forward.3} parent=0 // loop_body
    %s12 = ssub.s32 %s7, 1
    %s13 = ssub.s32 %s7, 2
    %s23 = sadd.s32 1, %s16
    %p24 = scmp.ge.s32.totalorder %s23, 1
    %s25 = scalar_select %p24, 0, %s23
    %s26 = sadd.s32 1, %s15
    %s27 = scalar_select %p24, %s26, %s15
    %p28 = scmp.ge.s32.totalorder %s27, 1
    %s29 = scalar_select %p28, 0, %s27
    %s30 = sadd.s32 1, %s14
    %s31 = scalar_select %p28, %s30, %s14
    %p32 = scmp.ge.s32.totalorder %s31, 2
    %s33 = scalar_select %p32, 0, %s31
    %s34 = ssub.s32 %s14, %s33
    %s35 = ssub.s32 %s15, %s29
    %s36 = sor.u32 %s34, %s35
    %p37 = scmp.eq.s32.totalorder %s36, 0
    %s39 = sadd.s32 %s38, 1
    %s40 = scalar_select %p37, %s38, %s39
    %p43 = pneg %p37
    %p44 = scmp.eq.s32.totalorder %s7, 1
    %p45 = por %p43, %p44
    %p46 = scmp.ne.s32.totalorder %s38, %s41
    %p47 = scmp.eq.s32.totalorder %s7, 0
    %p48 = por %p46, %p47
    %p49 = scmp.ne.s32.totalorder %s38, %s41
    %p50 = scmp.eq.s32.totalorder %s12, 1
    %p51 = por %p49, %p50
    %p52 = scmp.ne.s32.totalorder %s41, %s42
    %p53 = scmp.eq.s32.totalorder %s12, 0
    %p54 = por %p52, %p53
    %p55 = scmp.ne.s32.totalorder %s41, %s42
    %p56 = scmp.eq.s32.totalorder %s13, 1
    %p57 = por %p55, %p56
    %p59 = scmp.ne.s32.totalorder %s42, %s58
    %p60 = scmp.eq.s32.totalorder %s13, 0
    %p61 = por %p59, %p60
    %s62 = ssub.s32 %s14, %s33
    %s63 = ssub.s32 %s15, %s29
    %s64 = sor.u32 %s62, %s63
    %s65 = ssub.s32 %s16, %s25
    %s66 = sor.u32 %s64, %s65
    %p67 = scmp.eq.s32.totalorder %s66, 0
    %s69 = sadd.s32 %s68, 1
    %s70 = scalar_select %p67, %s68, %s69
    %p73 = pneg %p67
    %p74 = scmp.eq.s32.totalorder %s7, 1
    %p75 = por %p73, %p74
    %p76 = scmp.ne.s32.totalorder %s68, %s71
    %p77 = scmp.eq.s32.totalorder %s7, 0
    %p78 = por %p76, %p77
    %p79 = scmp.ne.s32.totalorder %s68, %s71
    %p80 = scmp.eq.s32.totalorder %s12, 1
    %p81 = por %p79, %p80
    %p82 = scmp.ne.s32.totalorder %s71, %s72
    %p83 = scmp.eq.s32.totalorder %s12, 0
    %p84 = por %p82, %p83
    %p85 = scmp.ne.s32.totalorder %s71, %s72
    %p86 = scmp.eq.s32.totalorder %s13, 1
    %p87 = por %p85, %p86
    %p89 = scmp.ne.s32.totalorder %s72, %s88
    %p90 = scmp.eq.s32.totalorder %s13, 0
    %p91 = por %p89, %p90
    %p92 = scmp.le.s32.totalorder 1, %s7
    %p93 = scmp.lt.s32.totalorder %s7, 3
    %p94 = pnand %p92, %p93
    %p95 = pneg %p94
    // Predicated region
    $region9: #{aspp_pooling_forward.3} parent=5 // pred_check
      _
    $region10: #{aspp_pooling_forward.3} parent=5 // pred_check_branch
      %97 = sbr.rel (%p94) target = $region12
    $region11: #{aspp_pooling_forward.3} parent=5 // pred_region
      %s98 = ssub.s32 %s7, 1
    $region12: #{aspp_pooling_forward.3} parent=5 // pred_fallthru
      _
    %p99 = scmp.lt.s32.totalorder %s7, 2
    // Predicated region
    $region13: #{aspp_pooling_forward.3} parent=5 // pred_check
      %p100 = pneg %p99
    $region14: #{aspp_pooling_forward.3} parent=5 // pred_check_branch
      %102 = sbr.rel (%p100) target = $region16
    $region15: #{aspp_pooling_forward.3} parent=5 // pred_region
      // Predicated region
      $region17: #{aspp_pooling_forward.3} parent=15 // pred_check
        %p103 = pneg %p48
      $region18: #{aspp_pooling_forward.3} parent=15 // pred_check_branch
        %105 = sbr.rel (%p103) target = $region20
      $region19: #{aspp_pooling_forward.3} parent=15 // pred_region
        %s106 = smul.u32 4, %s15
        %p107 = scmp.lt.s32.totalorder %s14, 1
        %s108 = scalar_select %p107, %s14, 1
        %p109 = scmp.lt.s32.totalorder %s106, 3
        %s110 = scalar_select %p109, %s106, 3
        %s111 = smul.addr %s108, 4
        %s112 = sadd.s32 %s110, %s111
        %s113 = smul.addr %s112, 8
        %s114 = scalar_lea.vmem %s0, %s113
        %s115 = smul.u32 4, %s15
      $region20: #{aspp_pooling_forward.3} parent=15 // pred_fallthru
        _
    $region16: #{aspp_pooling_forward.3} parent=5 // pred_fallthru
      _
    %p116 = scmp.le.s32.totalorder 1, %s7
    %p117 = scmp.lt.s32.totalorder %s7, 3
    %p118 = pnand %p116, %p117
    %p119 = pneg %p118
    // Predicated region
    $region21: #{aspp_pooling_forward.3} parent=5 // pred_check
      _
    $region22: #{aspp_pooling_forward.3} parent=5 // pred_check_branch
      %121 = sbr.rel (%p118) target = $region24
    $region23: #{aspp_pooling_forward.3} parent=5 // pred_region
      %s122 = ssub.s32 %s7, 1
      %s123 = smul.u32 4, %s18
      %p124 = scmp.lt.s32.totalorder %s17, 1
      %s125 = scalar_select %p124, %s17, 1
      %p126 = scmp.lt.s32.totalorder %s123, 3
      %s127 = scalar_select %p126, %s123, 3
      %s128 = smul.addr %s125, 4
      %s129 = sadd.s32 %s127, %s128
      %s130 = smul.addr %s129, 8
      %s131 = scalar_lea.vmem %s0, %s130
      %p132 = pneg %p54
      %p133 = pneg %p51
      %p134 = pneg %p84
      %p135 = pneg %p81
      %s136 = smul.u32 4, %s18
      %s137 = smul.u32 2, %s19
      %p138 = scmp.lt.s32.totalorder %s17, 1
      %s139 = scalar_select %p138, %s17, 1
      %p140 = scmp.lt.s32.totalorder %s136, 3
      %s141 = scalar_select %p140, %s136, 3
      %p142 = scmp.lt.s32.totalorder %s137, 1
      %s143 = scalar_select %p142, %s137, 1
      %s144 = smul.addr %s141, 2
      %s145 = sadd.s32 %s143, %s144
      %s146 = smul.addr %s139, 8
      %s147 = sadd.s32 %s145, %s146
      %s148 = smul.addr %s147, 8
      %s149 = scalar_lea.vmem %s1, %s148
      %s150 = smul.u32 4, %s18
      %p151 = scmp.lt.s32.totalorder %s17, 1
      %s152 = scalar_select %p151, %s17, 1
      %p153 = scmp.lt.s32.totalorder %s150, 3
      %s154 = scalar_select %p153, %s150, 3
      %s155 = smul.addr %s152, 4
      %s156 = sadd.s32 %s154, %s155
      %s157 = smul.addr %s156, 8
      %s158 = scalar_lea.vmem %s0, %s157
      %s159 = smul.u32 4, %s18
      %s160 = smul.u32 4, %s18
      %s161 = smul.u32 2, %s19
      %p162 = scmp.lt.s32.totalorder %s17, 1
      %s163 = scalar_select %p162, %s17, 1
      %p164 = scmp.lt.s32.totalorder %s160, 3
      %s165 = scalar_select %p164, %s160, 3
      %p166 = scmp.lt.s32.totalorder %s161, 1
      %s167 = scalar_select %p166, %s161, 1
      %s168 = smul.addr %s165, 2
      %s169 = sadd.s32 %s167, %s168
      %s170 = smul.addr %s163, 8
      %s171 = sadd.s32 %s169, %s170
      %s172 = smul.addr %s171, 8
      %s173 = scalar_lea.vmem %s1, %s172
      %s174 = smul.u32 4, %s18
      %s175 = smul.u32 2, %s19
      %v176 = vld [vmem:[%s158] sm:$0xff]
      %v177 = vld [vmem:[%s158 + $0x8] sm:$0xff]
      %v178 = vld [vmem:[%s158 + $0x10] sm:$0xff]
      %v179 = vld [vmem:[%s158 + $0x18] sm:$0xff]
      %181 = vset.pattern.permute.xlu0 0
      %182 = vperm.xlu0 %181, %v176
      %v183 = vpop.permute.xlu0 %182
      %186 = vset.pattern.permute.xlu0 0
      %187 = vperm.xlu0 %186, %v177
      %v188 = vpop.permute.xlu0 %187
      %191 = vset.pattern.permute.xlu0 0
      %192 = vperm.xlu0 %191, %v178
      %v193 = vpop.permute.xlu0 %192
      %196 = vset.pattern.permute.xlu0 0
      %197 = vperm.xlu0 %196, %v179
      %v198 = vpop.permute.xlu0 %197
      %200 = vst [vmem:[%s173] sm:$0xff] %v183
      %201 = vst [vmem:[%s173 + $0x8] sm:$0xff] %v183
      %202 = vst [vmem:[%s173 + $0x10] sm:$0xff] %v188
      %203 = vst [vmem:[%s173 + $0x18] sm:$0xff] %v188
      %204 = vst [vmem:[%s173 + $0x20] sm:$0xff] %v193
      %205 = vst [vmem:[%s173 + $0x28] sm:$0xff] %v193
      %206 = vst [vmem:[%s173 + $0x30] sm:$0xff] %v198
      %207 = vst [vmem:[%s173 + $0x38] sm:$0xff] %v198
      %s208 = smul.u32 4, %s18
      %s209 = smul.u32 2, %s19
      %p210 = scmp.lt.s32.totalorder %s17, 1
      %s211 = scalar_select %p210, %s17, 1
      %p212 = scmp.lt.s32.totalorder %s208, 3
      %s213 = scalar_select %p212, %s208, 3
      %p214 = scmp.lt.s32.totalorder %s209, 1
      %s215 = scalar_select %p214, %s209, 1
      %s216 = smul.addr %s213, 2
      %s217 = sadd.s32 %s215, %s216
      %s218 = smul.addr %s211, 8
      %s219 = sadd.s32 %s217, %s218
      %s220 = smul.addr %s219, 8
      %s221 = scalar_lea.vmem %s1, %s220
      // Predicated region
      $region25: #{aspp_pooling_forward.3} parent=23 // pred_check
        %p222 = pneg %p81
      $region26: #{aspp_pooling_forward.3} parent=23 // pred_check_branch
        %224 = sbr.rel (%p222) target = $region28
      $region27: #{aspp_pooling_forward.3} parent=23 // pred_region
        %s225 = smul.u32 4, %s18
        %s226 = smul.u32 2, %s19
      $region28: #{aspp_pooling_forward.3} parent=23 // pred_fallthru
        _
    $region24: #{aspp_pooling_forward.3} parent=5 // pred_fallthru
      _
    %p227 = scmp.le.s32.totalorder 2, %s7
    // Predicated region
    $region29: #{aspp_pooling_forward.3} parent=5 // pred_check
      %p228 = pneg %p227
    $region30: #{aspp_pooling_forward.3} parent=5 // pred_check_branch
      %230 = sbr.rel (%p228) target = $region32
    $region31: #{aspp_pooling_forward.3} parent=5 // pred_region
      %s231 = ssub.s32 %s7, 2
      // Predicated region
      $region33: #{aspp_pooling_forward.3} parent=31 // pred_check
        %p232 = pneg %p87
      $region34: #{aspp_pooling_forward.3} parent=31 // pred_check_branch
        %234 = sbr.rel (%p232) target = $region36
      $region35: #{aspp_pooling_forward.3} parent=31 // pred_region
        %s235 = smul.u32 4, %s21
        %s236 = smul.u32 2, %s22
        %p237 = scmp.lt.s32.totalorder %s20, 1
        %s238 = scalar_select %p237, %s20, 1
        %p239 = scmp.lt.s32.totalorder %s235, 3
        %s240 = scalar_select %p239, %s235, 3
        %p241 = scmp.lt.s32.totalorder %s236, 1
        %s242 = scalar_select %p241, %s236, 1
        %s243 = smul.addr %s240, 2
        %s244 = sadd.s32 %s242, %s243
        %s245 = smul.addr %s238, 8
        %s246 = sadd.s32 %s244, %s245
        %s247 = smul.addr %s246, 8
        %s248 = scalar_lea.vmem %s1, %s247
      $region36: #{aspp_pooling_forward.3} parent=31 // pred_fallthru
        _
    $region32: #{aspp_pooling_forward.3} parent=5 // pred_fallthru
      _
  $region6: #{aspp_pooling_forward.3} parent=0 // loop_footer
    %s11 = sadd.s32 1, %s7
  $region7: #{aspp_pooling_forward.3} parent=0 // loop_footer_branch
    %6 = sbr.rel target = $region3
  $region8: #{aspp_pooling_forward.3} parent=0 // loop_exit
    _

</llo_original>
